<compile_context>
chip_gen: v5e
topology: v5e:2x2
jax: 0.10.0
libtpu: 0.0.40
codegen_flags: <defaults>
</compile_context>

<pallas_src>
import math

import jax
import jax.numpy as jnp
from jax import lax
from jax.experimental import pallas as pl
from jax.experimental.pallas import tpu as pltpu

LANE = 128   # lane-alignment for gate blocks / MLP dims (256 would max v6e/v7x MXU
             # passes; 128 is correct everywhere and keeps padding overhead lower).


def _round_up(x, m):
    return ((x + m - 1) // m) * m


# ----------------------------------------------------------------------------
# Fused audio encoder: 3 x [Conv1d(k=3, pad=1) + LeakyReLU(0.2)], channels-last
# ----------------------------------------------------------------------------
def audio_encoder(x_bct, conv_params):
    """x_bct: (B, Cin, T). Returns (B, T, Cout) channels-last f32 activations.
    Intermediates never leave VMEM; a (T+2, E) scratch holds the zero-padded layer
    input instead of in-kernel concatenates."""
    B, Cin, T = x_bct.shape
    x = jnp.transpose(x_bct, (0, 2, 1)).astype(jnp.float32)      # (B, T, Cin)
    xp = jnp.pad(x, ((0, 0), (1, 1), (0, 0)))                    # zero-pad time
    (w1, b1), (w2, b2), (w3, b3) = conv_params                   # w: (3, Cin_l, Cout_l) bf16
    E = w1.shape[-1]
    Cout = w3.shape[-1]

    def kernel(x_ref, w1_ref, b1_ref, w2_ref, b2_ref, w3_ref, b3_ref, o_ref, pad_scr):
        def conv(src, w_ref, b_ref):
            # src(k) -> (T, Cin_l) f32 slice of the zero-padded layer input
            acc = jnp.zeros((T, w_ref.shape[2]), jnp.float32) + b_ref[...]
            for k in range(3):                                   # static taps
                acc = acc + jnp.dot(src(k).astype(jnp.bfloat16), w_ref[k],
                                    preferred_element_type=jnp.float32)
            return jnp.where(acc > 0, acc, 0.2 * acc)            # LeakyReLU(0.2)

        pad_scr[...] = jnp.zeros_like(pad_scr)                   # halo rows stay zero
        h1 = conv(lambda k: x_ref[0, k:k + T, :], w1_ref, b1_ref)
        pad_scr[1:T + 1, :] = h1
        h2 = conv(lambda k: pad_scr[k:k + T, :], w2_ref, b2_ref)
        pad_scr[1:T + 1, :] = h2
        h3 = conv(lambda k: pad_scr[k:k + T, :], w3_ref, b3_ref)
        o_ref[0] = h3

    return pl.pallas_call(
        kernel,
        out_shape=jax.ShapeDtypeStruct((B, T, Cout), jnp.float32),
        grid=(B,),
        in_specs=[
            pl.BlockSpec((1, T + 2, Cin), lambda i: (i, 0, 0)),
            pl.BlockSpec(w1.shape, lambda i: (0, 0, 0)),
            pl.BlockSpec(b1.shape, lambda i: (0, 0)),
            pl.BlockSpec(w2.shape, lambda i: (0, 0, 0)),
            pl.BlockSpec(b2.shape, lambda i: (0, 0)),
            pl.BlockSpec(w3.shape, lambda i: (0, 0, 0)),
            pl.BlockSpec(b3.shape, lambda i: (0, 0)),
        ],
        out_specs=pl.BlockSpec((1, T, Cout), lambda i: (i, 0, 0)),
        scratch_shapes=[pltpu.VMEM((T + 2, E), jnp.float32)],
        compiler_params=pltpu.CompilerParams(dimension_semantics=("parallel",)),
    )(xp, w1, b1, w2, b2, w3, b3)


# ----------------------------------------------------------------------------
# Time tiling plan for the fused GRU layer kernel
# ----------------------------------------------------------------------------
def _plan_time_tiling(T, B, Hp, sum_c, budget_bytes=8 * 1024 * 1024):
    """Per-timestep VMEM (f32 bytes): fwd+bwd input blocks (double-buffered) +
    fwd+bwd output blocks (double-buffered) + the two gi VMEM scratches."""
    per_t = B * (16 * sum_c + 16 * Hp + 24 * Hp)
    max_t = max(1, budget_bytes // max(per_t, 1))
    if T <= max_t:
        return T, 1                                  # whole sequence in one chunk
    align = 8 // math.gcd(B, 8)                      # keep tT*B a multiple of 8
    tT = max(align, (max_t // align) * align)
    nT = -(-T // tT)                                 # pad T up instead of tT -> 1
    return tT, nT


# ----------------------------------------------------------------------------
# One fused bidirectional GRU layer: input projection prologue + recurrence
# ----------------------------------------------------------------------------
def bigru_layer(x_parts, params, T, B, Hp, tT, nT):
    """x_parts: tuple of (>= T*B, Cp) f32 time-major row arrays (layer input split by
    feature block, so no (T,B,2H) concat is ever built between layers).
    Returns out_f, out_b each (nT*tT*B, Hp) f32; rows >= T*B are padding."""
    Tp = tT * nT
    n_parts = len(x_parts)
    xs = []
    for xpart in x_parts:
        if xpart.shape[0] < Tp * B:
            xpart = jnp.pad(xpart, ((0, Tp * B - xpart.shape[0]), (0, 0)))
        xs.append(xpart)
    cps = [xpart.shape[-1] for xpart in xs]
    H3 = 3 * Hp

    def kernel(*refs):
        pos = 0
        xf = refs[pos:pos + n_parts]; pos += n_parts          # fwd-ordered chunks
        xb = refs[pos:pos + n_parts]; pos += n_parts          # bwd-ordered chunks
        wih_f = refs[pos:pos + n_parts]; pos += n_parts
        bih_f, whh_f, bhh_f = refs[pos:pos + 3]; pos += 3
        wih_b = refs[pos:pos + n_parts]; pos += n_parts
        bih_b, whh_b, bhh_b = refs[pos:pos + 3]; pos += 3
        of_ref, ob_ref = refs[pos:pos + 2]; pos += 2
        hf_scr, hb_scr, gif_scr, gib_scr = refs[pos:pos + 4]

        @pl.when(pl.program_id(0) == 0)
        def _():
            hf_scr[...] = jnp.zeros_like(hf_scr)
            hb_scr[...] = jnp.zeros_like(hb_scr)

        # ---- chunk prologue: gate-fused input projection, both directions ----
        # gi = x @ W_ih + b_ih stays in VMEM scratch (no HBM round trip).
        acc_f = jnp.zeros((tT * B, H3), jnp.float32) + bih_f[...]
        acc_b = jnp.zeros((tT * B, H3), jnp.float32) + bih_b[...]
        for p in range(n_parts):
            acc_f = acc_f + jnp.dot(xf[p][...].astype(jnp.bfloat16), wih_f[p][...],
                                    preferred_element_type=jnp.float32)
            acc_b = acc_b + jnp.dot(xb[p][...].astype(jnp.bfloat16), wih_b[p][...],
                                    preferred_element_type=jnp.float32)
        gif_scr[...] = acc_f
        gib_scr[...] = acc_b

        chunk = pl.program_id(0)
        t0_b = (nT - 1 - chunk) * tT        # global time index of this bwd chunk's row 0

        def cell(gi, h, whh_ref, bhh_ref):
            # PyTorch GRUCell, gate order (r, z, n); b_hh lives inside the r * (.) term.
            gh = jnp.dot(h.astype(jnp.bfloat16), whh_ref[...],
                         preferred_element_type=jnp.float32) + bhh_ref[...]
            r = jax.nn.sigmoid(gi[:, 0:Hp] + gh[:, 0:Hp])
            z = jax.nn.sigmoid(gi[:, Hp:2 * Hp] + gh[:, Hp:2 * Hp])
            n = jnp.tanh(gi[:, 2 * Hp:3 * Hp] + r * gh[:, 2 * Hp:3 * Hp])
            return (1.0 - z) * n + z * h

        def step(t, carry):
            tb = tT - 1 - t                 # backward chain walks the chunk in reverse
            rf = pl.multiple_of(t * B, B)
            rb = pl.multiple_of(tb * B, B)
            h_f = cell(gif_scr[pl.ds(rf, B), :], hf_scr[...], whh_f, bhh_f)
            h_b_new = cell(gib_scr[pl.ds(rb, B), :], hb_scr[...], whh_b, bhh_b)
            # Padded timesteps (global time >= T) are a no-op for the backward chain
            # so its state is still zero when it reaches the real data.
            h_b = jnp.where(t0_b + tb < T, h_b_new, hb_scr[...])
            hf_scr[...] = h_f
            hb_scr[...] = h_b
            of_ref[pl.ds(rf, B), :] = h_f
            ob_ref[pl.ds(rb, B), :] = h_b
            return carry

        lax.fori_loop(0, tT, step, 0, unroll=2)

    in_specs = [pl.BlockSpec((tT * B, c), lambda i: (i, 0)) for c in cps]
    in_specs += [pl.BlockSpec((tT * B, c), lambda i, n=nT: (n - 1 - i, 0)) for c in cps]
    for d in ("f", "b"):
        in_specs += [pl.BlockSpec(w.shape, lambda i: (0, 0)) for w in params["wih_" + d]]
        in_specs += [pl.BlockSpec(params["bih_" + d].shape, lambda i: (0, 0)),
                     pl.BlockSpec(params["whh_" + d].shape, lambda i: (0, 0)),
                     pl.BlockSpec(params["bhh_" + d].shape, lambda i: (0, 0))]

    args = list(xs) + list(xs)              # same arrays, fwd-ordered + bwd-ordered specs
    for d in ("f", "b"):
        args += list(params["wih_" + d])
        args += [params["bih_" + d], params["whh_" + d], params["bhh_" + d]]

    out_f, out_b = pl.pallas_call(
        kernel,
        out_shape=(jax.ShapeDtypeStruct((Tp * B, Hp), jnp.float32),
                   jax.ShapeDtypeStruct((Tp * B, Hp), jnp.float32)),
        grid=(nT,),
        in_specs=in_specs,
        out_specs=(pl.BlockSpec((tT * B, Hp), lambda i: (i, 0)),
                   pl.BlockSpec((tT * B, Hp), lambda i, n=nT: (n - 1 - i, 0))),
        scratch_shapes=[pltpu.VMEM((B, Hp), jnp.float32),        # h fwd
                        pltpu.VMEM((B, Hp), jnp.float32),        # h bwd
                        pltpu.VMEM((tT * B, H3), jnp.float32),   # gi fwd (chunk)
                        pltpu.VMEM((tT * B, H3), jnp.float32)],  # gi bwd (chunk)
        compiler_params=pltpu.CompilerParams(
            dimension_semantics=("arbitrary",),
            vmem_limit_bytes=48 * 1024 * 1024),
    )(*args)
    return out_f, out_b


# ----------------------------------------------------------------------------
# (fwd + bwd) -> Linear(H, H//2) -> LeakyReLU(0.01) -> Linear(H//2, P), row-tiled
# ----------------------------------------------------------------------------
def _row_tile(N, tile=256):     # 256 keeps v5e's 16 MiB default scoped VMEM safe
    tN = tile
    if N < tN:
        tN = max(8, _round_up(N, 8))
    return tN, _round_up(N, tN)


def out_mlp(out_f, out_b, n_valid, w1, b1, w2, b2, pose_dim):
    """out_f/out_b: (>= n_valid, Hp) f32. Weights are lane-padded; padded output
    columns (and padded rows) are sliced off at the end."""
    Hp = out_f.shape[-1]
    Pp = w2.shape[-1]
    f = out_f[:n_valid]
    g = out_b[:n_valid]
    tN, Np = _row_tile(n_valid)
    if Np != n_valid:
        f = jnp.pad(f, ((0, Np - n_valid), (0, 0)))
        g = jnp.pad(g, ((0, Np - n_valid), (0, 0)))

    def kernel(f_ref, g_ref, w1_ref, b1_ref, w2_ref, b2_ref, o_ref):
        x = (f_ref[...] + g_ref[...]).astype(jnp.bfloat16)       # sum fwd/bwd halves
        h = jnp.dot(x, w1_ref[...], preferred_element_type=jnp.float32) + b1_ref[...]
        h = jnp.where(h > 0, h, 0.01 * h)                        # nn.LeakyReLU default
        o_ref[...] = jnp.dot(h.astype(jnp.bfloat16), w2_ref[...],
                             preferred_element_type=jnp.float32) + b2_ref[...]

    y = pl.pallas_call(
        kernel,
        out_shape=jax.ShapeDtypeStruct((Np, Pp), jnp.float32),
        grid=(Np // tN,),
        in_specs=[
            pl.BlockSpec((tN, Hp), lambda i: (i, 0)),
            pl.BlockSpec((tN, Hp), lambda i: (i, 0)),
            pl.BlockSpec(w1.shape, lambda i: (0, 0)),
            pl.BlockSpec(b1.shape, lambda i: (0, 0)),
            pl.BlockSpec(w2.shape, lambda i: (0, 0)),
            pl.BlockSpec(b2.shape, lambda i: (0, 0)),
        ],
        out_specs=pl.BlockSpec((tN, Pp), lambda i: (i, 0)),
        compiler_params=pltpu.CompilerParams(dimension_semantics=("parallel",)),
    )(f, g, w1, b1, w2, b2)
    return y[:n_valid, :pose_dim]


# ----------------------------------------------------------------------------
# Generator
# ----------------------------------------------------------------------------
class Generator:
    def __init__(self, audio_dim, embed_dim, pose_dim, hidden_size, dropout_p,
                 z_size, num_layers, *, key):
        self.audio_dim = audio_dim
        self.embed_dim = embed_dim
        self.pose_dim = pose_dim
        self.hidden_size = hidden_size
        self.z_size = z_size
        self.num_layers = num_layers
        self.dropout_p = dropout_p  # defined but unused in forward (matches PyTorch)

        H = hidden_size
        Hp = _round_up(H, LANE)
        self.Hp = Hp
        H2p = _round_up(max(H // 2, 1), LANE)
        Pp = _round_up(pose_dim, LANE)

        def init(k, shape, scale=0.1):
            return scale * jax.random.normal(k, shape, dtype=jnp.float32)

        keys = iter(jax.random.split(key, 8 + 8 * num_layers + 8))

        # audio_encoder: 3 conv layers (min_layer_nums=3), audio_dim -> embed_dim
        # TODO(synk): BatchNorm inside ConvNormRelu (external helper) is omitted.
        chans = [audio_dim, embed_dim, embed_dim, embed_dim]
        self.conv_params = []
        for cin, cout in zip(chans[:-1], chans[1:]):
            w = init(next(keys), (cout, cin, 3))                 # PyTorch (Cout, Cin, K)
            b = init(next(keys), (cout,))
            w_taps = jnp.transpose(w, (2, 1, 0)).astype(jnp.bfloat16)   # (3, Cin, Cout)
            self.conv_params.append((w_taps, b.reshape(1, cout)))

        # bidirectional GRU (PyTorch layout: w_ih (3H, Cin), w_hh (3H, H)); weights
        # stored gate-fused and lane-padded: W_ih part -> (Cp_pad, 3Hp) bf16,
        # W_hh -> (Hp, 3Hp) bf16, biases (1, 3Hp) f32.
        in_size = embed_dim + pose_dim + z_size
        self.gru_params = []
        for layer in range(num_layers):
            if layer == 0:
                part_dims, part_pads = [in_size], [in_size]
            else:
                part_dims, part_pads = [H, H], [Hp, Hp]          # [fwd, bwd] halves
            cin = sum(part_dims)
            lp = {}
            for d in ("f", "b"):
                w_ih = init(next(keys), (3 * H, cin))
                w_hh = init(next(keys), (3 * H, H))
                b_ih = init(next(keys), (3 * H,))
                b_hh = init(next(keys), (3 * H,))
                lp["wih_" + d] = self._prep_wih(w_ih, part_dims, part_pads, H, Hp)
                lp["whh_" + d] = self._prep_whh(w_hh, H, Hp)
                lp["bih_" + d] = self._prep_bias(b_ih, H, Hp)
                lp["bhh_" + d] = self._prep_bias(b_hh, H, Hp)
            self.gru_params.append(lp)

        # output MLP (transposed, lane-padded, bf16 MXU operands)
        w1 = init(next(keys), (H // 2, H))
        b1 = init(next(keys), (H // 2,))
        w2 = init(next(keys), (pose_dim, H // 2))
        b2 = init(next(keys), (pose_dim,))
        self.w1 = jnp.zeros((Hp, H2p), jnp.float32).at[:H, :H // 2].set(w1.T).astype(jnp.bfloat16)
        self.b1 = jnp.zeros((1, H2p), jnp.float32).at[0, :H // 2].set(b1)
        self.w2 = jnp.zeros((H2p, Pp), jnp.float32).at[:H // 2, :pose_dim].set(w2.T).astype(jnp.bfloat16)
        self.b2 = jnp.zeros((1, Pp), jnp.float32).at[0, :pose_dim].set(b2)

    @staticmethod
    def _prep_wih(w_ih, part_dims, part_pads, H, Hp):
        parts, col = [], 0
        for cin_p, cp_pad in zip(part_dims, part_pads):
            gates = []
            for g in range(3):                                   # r, z, n
                wg = w_ih[g * H:(g + 1) * H, col:col + cin_p].T  # (cin_p, H)
                gates.append(jnp.zeros((cp_pad, Hp), jnp.float32).at[:cin_p, :H].set(wg))
            parts.append(jnp.concatenate(gates, axis=1).astype(jnp.bfloat16))
            col += cin_p
        return parts

    @staticmethod
    def _prep_whh(w_hh, H, Hp):
        gates = []
        for g in range(3):
            wg = w_hh[g * H:(g + 1) * H, :].T                    # (H, H)
            gates.append(jnp.zeros((Hp, Hp), jnp.float32).at[:H, :H].set(wg))
        return jnp.concatenate(gates, axis=1).astype(jnp.bfloat16)

    @staticmethod
    def _prep_bias(b, H, Hp):
        out = jnp.zeros((1, 3 * Hp), jnp.float32)
        for g in range(3):
            out = out.at[0, g * Hp:g * Hp + H].set(b[g * H:(g + 1) * H])
        return out

    def __call__(self, in_audio, pre_seq, z_key):
        """in_audio: (B, audio_dim, T); pre_seq: (B, pose_dim, T)."""
        B, _, T = in_audio.shape
        Hp = self.Hp

        # fused conv stack (channels-last output)
        audio_feat = audio_encoder(in_audio, self.conv_params)   # (B, T, E)

        # time-major GRU input: [pre_seq, audio_feat, z] along features
        pre_tbc = jnp.transpose(pre_seq.astype(jnp.float32), (2, 0, 1))   # (T, B, P)
        aud_tbc = jnp.transpose(audio_feat, (1, 0, 2))                    # (T, B, E)
        z_context = jax.random.normal(z_key, (B, self.z_size), dtype=jnp.float32)
        z_tbc = jnp.broadcast_to(z_context[None, :, :], (T, B, self.z_size))
        x0 = jnp.concatenate([pre_tbc, aud_tbc, z_tbc], axis=-1)         # (T, B, C0)
        x_parts = (x0.reshape(T * B, -1),)                               # free reshape

        # shared time tiling for all layers (worst-case input width)
        sum_c_max = max(x_parts[0].shape[-1], 2 * Hp)
        tT, nT = _plan_time_tiling(T, B, Hp, sum_c_max)

        out_f = out_b = None
        for layer in range(self.num_layers):
            out_f, out_b = bigru_layer(x_parts, self.gru_params[layer],
                                       T, B, Hp, tT, nT)
            x_parts = (out_f, out_b)        # next layer consumes the two halves directly

        # sum fwd/bwd halves + output MLP (row-tiled Pallas kernel), strip padding
        y = out_mlp(out_f, out_b, T * B, self.w1, self.b1, self.w2, self.b2,
                    self.pose_dim)                                        # (T*B, P)
        y = y.reshape(T, B, self.pose_dim).transpose(1, 2, 0)             # (B, P, T)
        return y, z_context


# ----------------------------------------------------------------------------
if __name__ == "__main__":
    B, T = 2, 8
    audio_dim, embed_dim, pose_dim = 4, 8, 6
    hidden_size, z_size, num_layers = 16, 4, 2
    dropout_p = 0.1

    key = jax.random.PRNGKey(0)
    k_param, k_audio, k_pose, k_z = jax.random.split(key, 4)

    gen = Generator(audio_dim, embed_dim, pose_dim, hidden_size, dropout_p,
                    z_size, num_layers, key=k_param)

    in_audio = jax.random.normal(k_audio, (B, audio_dim, T), dtype=jnp.float32)
    pre_seq = jax.random.normal(k_pose, (B, pose_dim, T), dtype=jnp.float32)

    output, z_context = gen(in_audio, pre_seq, k_z)
    jax.block_until_ready(output)
    jax.block_until_ready(z_context)

    assert output.shape == (B, pose_dim, T), output.shape
    assert z_context.shape == (B, z_size), z_context.shape
    assert output.dtype == jnp.float32
    assert bool(jnp.all(jnp.isfinite(output)))

    print("KERNEL_OK")
</pallas_src>

<mosaic_0001>
module attributes {stable_mosaic.version = 11 : i64} {
  func.func @kernel(%arg0: i32, %arg1: memref<1x10x4xf32, #tpu.memory_space<vmem>>, %arg2: memref<3x4x8xbf16, #tpu.memory_space<vmem>>, %arg3: memref<1x8xf32, #tpu.memory_space<vmem>>, %arg4: memref<3x8x8xbf16, #tpu.memory_space<vmem>>, %arg5: memref<1x8xf32, #tpu.memory_space<vmem>>, %arg6: memref<3x8x8xbf16, #tpu.memory_space<vmem>>, %arg7: memref<1x8xf32, #tpu.memory_space<vmem>>, %arg8: memref<1x8x8xf32, #tpu.memory_space<vmem>>, %arg9: memref<10x8xf32, #tpu.memory_space<vmem>>) attributes {dimension_semantics = [#tpu.dimension_semantics<parallel>], iteration_bounds = array<i64: 2>, scalar_prefetch = 0 : i64, scratch_operands = 1 : i64, tpu.core_type = #tpu.core_type<tc>, window_params = [{transform_indices = @transform_0, window_bounds = array<i64: 1, 10, 4>}, {pipeline_mode = #tpu.pipeline_mode<synchronous>, transform_indices = @transform_1, window_bounds = array<i64: 3, 4, 8>}, {pipeline_mode = #tpu.pipeline_mode<synchronous>, transform_indices = @transform_2, window_bounds = array<i64: 1, 8>}, {pipeline_mode = #tpu.pipeline_mode<synchronous>, transform_indices = @transform_3, window_bounds = array<i64: 3, 8, 8>}, {pipeline_mode = #tpu.pipeline_mode<synchronous>, transform_indices = @transform_4, window_bounds = array<i64: 1, 8>}, {pipeline_mode = #tpu.pipeline_mode<synchronous>, transform_indices = @transform_5, window_bounds = array<i64: 3, 8, 8>}, {pipeline_mode = #tpu.pipeline_mode<synchronous>, transform_indices = @transform_6, window_bounds = array<i64: 1, 8>}, {transform_indices = @transform_7, window_bounds = array<i64: 1, 8, 8>}]} {
    %cst = arith.constant 0.000000e+00 : f32
    %0 = vector.broadcast %cst : f32 to vector<10x8xf32>
    %c0 = arith.constant 0 : index
    %c0_0 = arith.constant 0 : index
    %1 = vector.load %arg9[%c0, %c0_0] : memref<10x8xf32, #tpu.memory_space<vmem>>, vector<10x8xf32>
    tpu.vector_store %arg9[%c0, %c0_0], %0 {strides = array<i32>} : memref<10x8xf32, #tpu.memory_space<vmem>>, vector<10x8xf32>,
    %cst_1 = arith.constant 0.000000e+00 : f32
    %2 = vector.broadcast %cst_1 : f32 to vector<8x8xf32>
    %c0_2 = arith.constant 0 : index
    %c0_3 = arith.constant 0 : index
    %3 = vector.load %arg3[%c0_2, %c0_3] : memref<1x8xf32, #tpu.memory_space<vmem>>, vector<1x8xf32>
    %4 = vector.broadcast %3 : vector<1x8xf32> to vector<8x8xf32>
    %5 = arith.addf %2, %4 : vector<8x8xf32>
    %c0_4 = arith.constant 0 : index
    %c0_5 = arith.constant 0 : index
    %c0_6 = arith.constant 0 : index
    %6 = vector.load %arg1[%c0_4, %c0_5, %c0_6] : memref<1x10x4xf32, #tpu.memory_space<vmem>>, vector<1x8x4xf32>
    %7 = vector.shape_cast %6 : vector<1x8x4xf32> to vector<8x4xf32>
    %8 = arith.truncf %7 : vector<8x4xf32> to vector<8x4xbf16>
    %c0_7 = arith.constant 0 : index
    %c0_8 = arith.constant 0 : index
    %c0_9 = arith.constant 0 : index
    %9 = vector.load %arg2[%c0_7, %c0_8, %c0_9] : memref<3x4x8xbf16, #tpu.memory_space<vmem>>, vector<1x4x8xbf16>
    %10 = vector.shape_cast %9 : vector<1x4x8xbf16> to vector<4x8xbf16>
    %cst_10 = arith.constant dense<0.000000e+00> : vector<8x8xf32>
    %11 = tpu.matmul %8, %10, %cst_10 {dimension_numbers = #tpu.dot_dimension_numbers<[1], [0], [0], [1], [0, 0, 1, 1], [], []>} : vector<8x4xbf16>, vector<4x8xbf16>, vector<8x8xf32> -> vector<8x8xf32>
    %12 = arith.addf %5, %11 : vector<8x8xf32>
    %c0_11 = arith.constant 0 : index
    %c1 = arith.constant 1 : index
    %c0_12 = arith.constant 0 : index
    %13 = vector.load %arg1[%c0_11, %c1, %c0_12] : memref<1x10x4xf32, #tpu.memory_space<vmem>>, vector<1x8x4xf32>
    %14 = vector.shape_cast %13 : vector<1x8x4xf32> to vector<8x4xf32>
    %15 = arith.truncf %14 : vector<8x4xf32> to vector<8x4xbf16>
    %c1_13 = arith.constant 1 : index
    %c0_14 = arith.constant 0 : index
    %c0_15 = arith.constant 0 : index
    %16 = vector.load %arg2[%c1_13, %c0_14, %c0_15] : memref<3x4x8xbf16, #tpu.memory_space<vmem>>, vector<1x4x8xbf16>
    %17 = vector.shape_cast %16 : vector<1x4x8xbf16> to vector<4x8xbf16>
    %cst_16 = arith.constant dense<0.000000e+00> : vector<8x8xf32>
    %18 = tpu.matmul %15, %17, %cst_16 {dimension_numbers = #tpu.dot_dimension_numbers<[1], [0], [0], [1], [0, 0, 1, 1], [], []>} : vector<8x4xbf16>, vector<4x8xbf16>, vector<8x8xf32> -> vector<8x8xf32>
    %19 = arith.addf %12, %18 : vector<8x8xf32>
    %c0_17 = arith.constant 0 : index
    %c2 = arith.constant 2 : index
    %c0_18 = arith.constant 0 : index
    %20 = vector.load %arg1[%c0_17, %c2, %c0_18] : memref<1x10x4xf32, #tpu.memory_space<vmem>>, vector<1x8x4xf32>
    %21 = vector.shape_cast %20 : vector<1x8x4xf32> to vector<8x4xf32>
    %22 = arith.truncf %21 : vector<8x4xf32> to vector<8x4xbf16>
    %c2_19 = arith.constant 2 : index
    %c0_20 = arith.constant 0 : index
    %c0_21 = arith.constant 0 : index
    %23 = vector.load %arg2[%c2_19, %c0_20, %c0_21] : memref<3x4x8xbf16, #tpu.memory_space<vmem>>, vector<1x4x8xbf16>
    %24 = vector.shape_cast %23 : vector<1x4x8xbf16> to vector<4x8xbf16>
    %cst_22 = arith.constant dense<0.000000e+00> : vector<8x8xf32>
    %25 = tpu.matmul %22, %24, %cst_22 {dimension_numbers = #tpu.dot_dimension_numbers<[1], [0], [0], [1], [0, 0, 1, 1], [], []>} : vector<8x4xbf16>, vector<4x8xbf16>, vector<8x8xf32> -> vector<8x8xf32>
    %26 = arith.addf %19, %25 : vector<8x8xf32>
    %cst_23 = arith.constant 0.000000e+00 : f32
    %27 = vector.broadcast %cst_23 : f32 to vector<8x8xf32>
    %28 = arith.cmpf ogt, %26, %27 : vector<8x8xf32>
    %cst_24 = arith.constant 2.000000e-01 : f32
    %29 = vector.broadcast %cst_24 : f32 to vector<8x8xf32>
    %30 = arith.mulf %29, %26 : vector<8x8xf32>
    %31 = arith.select %28, %26, %30 : vector<8x8xi1>, vector<8x8xf32>
    %c1_25 = arith.constant 1 : index
    %c0_26 = arith.constant 0 : index
    %32 = vector.load %arg9[%c1_25, %c0_26] : memref<10x8xf32, #tpu.memory_space<vmem>>, vector<8x8xf32>
    tpu.vector_store %arg9[%c1_25, %c0_26], %31 {strides = array<i32>} : memref<10x8xf32, #tpu.memory_space<vmem>>, vector<8x8xf32>,
    %cst_27 = arith.constant 0.000000e+00 : f32
    %33 = vector.broadcast %cst_27 : f32 to vector<8x8xf32>
    %c0_28 = arith.constant 0 : index
    %c0_29 = arith.constant 0 : index
    %34 = vector.load %arg5[%c0_28, %c0_29] : memref<1x8xf32, #tpu.memory_space<vmem>>, vector<1x8xf32>
    %35 = vector.broadcast %34 : vector<1x8xf32> to vector<8x8xf32>
    %36 = arith.addf %33, %35 : vector<8x8xf32>
    %c0_30 = arith.constant 0 : index
    %c0_31 = arith.constant 0 : index
    %37 = vector.load %arg9[%c0_30, %c0_31] : memref<10x8xf32, #tpu.memory_space<vmem>>, vector<8x8xf32>
    %38 = arith.truncf %37 : vector<8x8xf32> to vector<8x8xbf16>
    %c0_32 = arith.constant 0 : index
    %c0_33 = arith.constant 0 : index
    %c0_34 = arith.constant 0 : index
    %39 = vector.load %arg4[%c0_32, %c0_33, %c0_34] : memref<3x8x8xbf16, #tpu.memory_space<vmem>>, vector<1x8x8xbf16>
    %40 = vector.shape_cast %39 : vector<1x8x8xbf16> to vector<8x8xbf16>
    %cst_35 = arith.constant dense<0.000000e+00> : vector<8x8xf32>
    %41 = tpu.matmul %38, %40, %cst_35 {dimension_numbers = #tpu.dot_dimension_numbers<[1], [0], [0], [1], [0, 0, 1, 1], [], []>} : vector<8x8xbf16>, vector<8x8xbf16>, vector<8x8xf32> -> vector<8x8xf32>
    %42 = arith.addf %36, %41 : vector<8x8xf32>
    %c1_36 = arith.constant 1 : index
    %c0_37 = arith.constant 0 : index
    %43 = vector.load %arg9[%c1_36, %c0_37] : memref<10x8xf32, #tpu.memory_space<vmem>>, vector<8x8xf32>
    %44 = arith.truncf %43 : vector<8x8xf32> to vector<8x8xbf16>
    %c1_38 = arith.constant 1 : index
    %c0_39 = arith.constant 0 : index
    %c0_40 = arith.constant 0 : index
    %45 = vector.load %arg4[%c1_38, %c0_39, %c0_40] : memref<3x8x8xbf16, #tpu.memory_space<vmem>>, vector<1x8x8xbf16>
    %46 = vector.shape_cast %45 : vector<1x8x8xbf16> to vector<8x8xbf16>
    %cst_41 = arith.constant dense<0.000000e+00> : vector<8x8xf32>
    %47 = tpu.matmul %44, %46, %cst_41 {dimension_numbers = #tpu.dot_dimension_numbers<[1], [0], [0], [1], [0, 0, 1, 1], [], []>} : vector<8x8xbf16>, vector<8x8xbf16>, vector<8x8xf32> -> vector<8x8xf32>
    %48 = arith.addf %42, %47 : vector<8x8xf32>
    %c2_42 = arith.constant 2 : index
    %c0_43 = arith.constant 0 : index
    %49 = vector.load %arg9[%c2_42, %c0_43] : memref<10x8xf32, #tpu.memory_space<vmem>>, vector<8x8xf32>
    %50 = arith.truncf %49 : vector<8x8xf32> to vector<8x8xbf16>
    %c2_44 = arith.constant 2 : index
    %c0_45 = arith.constant 0 : index
    %c0_46 = arith.constant 0 : index
    %51 = vector.load %arg4[%c2_44, %c0_45, %c0_46] : memref<3x8x8xbf16, #tpu.memory_space<vmem>>, vector<1x8x8xbf16>
    %52 = vector.shape_cast %51 : vector<1x8x8xbf16> to vector<8x8xbf16>
    %cst_47 = arith.constant dense<0.000000e+00> : vector<8x8xf32>
    %53 = tpu.matmul %50, %52, %cst_47 {dimension_numbers = #tpu.dot_dimension_numbers<[1], [0], [0], [1], [0, 0, 1, 1], [], []>} : vector<8x8xbf16>, vector<8x8xbf16>, vector<8x8xf32> -> vector<8x8xf32>
    %54 = arith.addf %48, %53 : vector<8x8xf32>
    %cst_48 = arith.constant 0.000000e+00 : f32
    %55 = vector.broadcast %cst_48 : f32 to vector<8x8xf32>
    %56 = arith.cmpf ogt, %54, %55 : vector<8x8xf32>
    %cst_49 = arith.constant 2.000000e-01 : f32
    %57 = vector.broadcast %cst_49 : f32 to vector<8x8xf32>
    %58 = arith.mulf %57, %54 : vector<8x8xf32>
    %59 = arith.select %56, %54, %58 : vector<8x8xi1>, vector<8x8xf32>
    %c1_50 = arith.constant 1 : index
    %c0_51 = arith.constant 0 : index
    %60 = vector.load %arg9[%c1_50, %c0_51] : memref<10x8xf32, #tpu.memory_space<vmem>>, vector<8x8xf32>
    tpu.vector_store %arg9[%c1_50, %c0_51], %59 {strides = array<i32>} : memref<10x8xf32, #tpu.memory_space<vmem>>, vector<8x8xf32>,
    %cst_52 = arith.constant 0.000000e+00 : f32
    %61 = vector.broadcast %cst_52 : f32 to vector<8x8xf32>
    %c0_53 = arith.constant 0 : index
    %c0_54 = arith.constant 0 : index
    %62 = vector.load %arg7[%c0_53, %c0_54] : memref<1x8xf32, #tpu.memory_space<vmem>>, vector<1x8xf32>
    %63 = vector.broadcast %62 : vector<1x8xf32> to vector<8x8xf32>
    %64 = arith.addf %61, %63 : vector<8x8xf32>
    %c0_55 = arith.constant 0 : index
    %c0_56 = arith.constant 0 : index
    %65 = vector.load %arg9[%c0_55, %c0_56] : memref<10x8xf32, #tpu.memory_space<vmem>>, vector<8x8xf32>
    %66 = arith.truncf %65 : vector<8x8xf32> to vector<8x8xbf16>
    %c0_57 = arith.constant 0 : index
    %c0_58 = arith.constant 0 : index
    %c0_59 = arith.constant 0 : index
    %67 = vector.load %arg6[%c0_57, %c0_58, %c0_59] : memref<3x8x8xbf16, #tpu.memory_space<vmem>>, vector<1x8x8xbf16>
    %68 = vector.shape_cast %67 : vector<1x8x8xbf16> to vector<8x8xbf16>
    %cst_60 = arith.constant dense<0.000000e+00> : vector<8x8xf32>
    %69 = tpu.matmul %66, %68, %cst_60 {dimension_numbers = #tpu.dot_dimension_numbers<[1], [0], [0], [1], [0, 0, 1, 1], [], []>} : vector<8x8xbf16>, vector<8x8xbf16>, vector<8x8xf32> -> vector<8x8xf32>
    %70 = arith.addf %64, %69 : vector<8x8xf32>
    %c1_61 = arith.constant 1 : index
    %c0_62 = arith.constant 0 : index
    %71 = vector.load %arg9[%c1_61, %c0_62] : memref<10x8xf32, #tpu.memory_space<vmem>>, vector<8x8xf32>
    %72 = arith.truncf %71 : vector<8x8xf32> to vector<8x8xbf16>
    %c1_63 = arith.constant 1 : index
    %c0_64 = arith.constant 0 : index
    %c0_65 = arith.constant 0 : index
    %73 = vector.load %arg6[%c1_63, %c0_64, %c0_65] : memref<3x8x8xbf16, #tpu.memory_space<vmem>>, vector<1x8x8xbf16>
    %74 = vector.shape_cast %73 : vector<1x8x8xbf16> to vector<8x8xbf16>
    %cst_66 = arith.constant dense<0.000000e+00> : vector<8x8xf32>
    %75 = tpu.matmul %72, %74, %cst_66 {dimension_numbers = #tpu.dot_dimension_numbers<[1], [0], [0], [1], [0, 0, 1, 1], [], []>} : vector<8x8xbf16>, vector<8x8xbf16>, vector<8x8xf32> -> vector<8x8xf32>
    %76 = arith.addf %70, %75 : vector<8x8xf32>
    %c2_67 = arith.constant 2 : index
    %c0_68 = arith.constant 0 : index
    %77 = vector.load %arg9[%c2_67, %c0_68] : memref<10x8xf32, #tpu.memory_space<vmem>>, vector<8x8xf32>
    %78 = arith.truncf %77 : vector<8x8xf32> to vector<8x8xbf16>
    %c2_69 = arith.constant 2 : index
    %c0_70 = arith.constant 0 : index
    %c0_71 = arith.constant 0 : index
    %79 = vector.load %arg6[%c2_69, %c0_70, %c0_71] : memref<3x8x8xbf16, #tpu.memory_space<vmem>>, vector<1x8x8xbf16>
    %80 = vector.shape_cast %79 : vector<1x8x8xbf16> to vector<8x8xbf16>
    %cst_72 = arith.constant dense<0.000000e+00> : vector<8x8xf32>
    %81 = tpu.matmul %78, %80, %cst_72 {dimension_numbers = #tpu.dot_dimension_numbers<[1], [0], [0], [1], [0, 0, 1, 1], [], []>} : vector<8x8xbf16>, vector<8x8xbf16>, vector<8x8xf32> -> vector<8x8xf32>
    %82 = arith.addf %76, %81 : vector<8x8xf32>
    %cst_73 = arith.constant 0.000000e+00 : f32
    %83 = vector.broadcast %cst_73 : f32 to vector<8x8xf32>
    %84 = arith.cmpf ogt, %82, %83 : vector<8x8xf32>
    %cst_74 = arith.constant 2.000000e-01 : f32
    %85 = vector.broadcast %cst_74 : f32 to vector<8x8xf32>
    %86 = arith.mulf %85, %82 : vector<8x8xf32>
    %87 = arith.select %84, %82, %86 : vector<8x8xi1>, vector<8x8xf32>
    %c0_75 = arith.constant 0 : index
    %c0_76 = arith.constant 0 : index
    %c0_77 = arith.constant 0 : index
    %88 = vector.load %arg8[%c0_75, %c0_76, %c0_77] : memref<1x8x8xf32, #tpu.memory_space<vmem>>, vector<1x8x8xf32>
    %89 = vector.shape_cast %88 : vector<1x8x8xf32> to vector<8x8xf32>
    %90 = vector.shape_cast %87 : vector<8x8xf32> to vector<1x8x8xf32>
    tpu.vector_store %arg8[%c0_75, %c0_76, %c0_77], %90 {strides = array<i32>} : memref<1x8x8xf32, #tpu.memory_space<vmem>>, vector<1x8x8xf32>,
    return
  }
  func.func @transform_0(%arg0: i32) -> (i32, i32, i32) {
    %c0_i32 = arith.constant 0 : i32
    %c0_i32_0 = arith.constant 0 : i32
    %c0_i32_1 = arith.constant 0 : i32
    return %arg0, %c0_i32, %c0_i32_0 : i32, i32, i32
  }
  func.func @transform_1(%arg0: i32) -> (i32, i32, i32) {
    %c0_i32 = arith.constant 0 : i32
    %c0_i32_0 = arith.constant 0 : i32
    %c0_i32_1 = arith.constant 0 : i32
    %c0_i32_2 = arith.constant 0 : i32
    return %c0_i32, %c0_i32_0, %c0_i32_1 : i32, i32, i32
  }
  func.func @transform_2(%arg0: i32) -> (i32, i32) {
    %c0_i32 = arith.constant 0 : i32
    %c0_i32_0 = arith.constant 0 : i32
    %c0_i32_1 = arith.constant 0 : i32
    return %c0_i32, %c0_i32_0 : i32, i32
  }
  func.func @transform_3(%arg0: i32) -> (i32, i32, i32) {
    %c0_i32 = arith.constant 0 : i32
    %c0_i32_0 = arith.constant 0 : i32
    %c0_i32_1 = arith.constant 0 : i32
    %c0_i32_2 = arith.constant 0 : i32
    return %c0_i32, %c0_i32_0, %c0_i32_1 : i32, i32, i32
  }
  func.func @transform_4(%arg0: i32) -> (i32, i32) {
    %c0_i32 = arith.constant 0 : i32
    %c0_i32_0 = arith.constant 0 : i32
    %c0_i32_1 = arith.constant 0 : i32
    return %c0_i32, %c0_i32_0 : i32, i32
  }
  func.func @transform_5(%arg0: i32) -> (i32, i32, i32) {
    %c0_i32 = arith.constant 0 : i32
    %c0_i32_0 = arith.constant 0 : i32
    %c0_i32_1 = arith.constant 0 : i32
    %c0_i32_2 = arith.constant 0 : i32
    return %c0_i32, %c0_i32_0, %c0_i32_1 : i32, i32, i32
  }
  func.func @transform_6(%arg0: i32) -> (i32, i32) {
    %c0_i32 = arith.constant 0 : i32
    %c0_i32_0 = arith.constant 0 : i32
    %c0_i32_1 = arith.constant 0 : i32
    return %c0_i32, %c0_i32_0 : i32, i32
  }
  func.func @transform_7(%arg0: i32) -> (i32, i32, i32) {
    %c0_i32 = arith.constant 0 : i32
    %c0_i32_0 = arith.constant 0 : i32
    %c0_i32_1 = arith.constant 0 : i32
    return %arg0, %c0_i32, %c0_i32_0 : i32, i32, i32
  }
}

</mosaic_0001>

<llo_original>
// kernel: tpu_custom_call.1
$region0: #{tpu_custom_call.1}
  #allocation0 [shape = 'u32[]', space=smem, size = 0x4, offset = 0x4, fixed_abs, tag = 'smem constant byte address 0x4 - core index']
  #allocation1 [shape = 'u32[72,128]{1,0:T(1,128)}', space=vmem, size = 0x9000, scoped, tag = 'internal scratch']
  #allocation2 [shape = 'f32[10,8]{1,0:T(8,128)}', space=vmem, size = 0x2000, scoped, tag = 'scratch operand']
  %s0 = inlined_call_operand.vmem [shape: f32[2,10,4], index: 0, kind: input, shape index: {}]
  %s1 = inlined_call_operand.vmem [shape: bf16[3,4,8], index: 1, kind: input, shape index: {}]
  %s2 = inlined_call_operand.vmem [shape: f32[1,8], index: 2, kind: input, shape index: {}]
  %s3 = inlined_call_operand.vmem [shape: bf16[3,8,8], index: 3, kind: input, shape index: {}]
  %s4 = inlined_call_operand.vmem [shape: f32[1,8], index: 4, kind: input, shape index: {}]
  %s5 = inlined_call_operand.vmem [shape: bf16[3,8,8], index: 5, kind: input, shape index: {}]
  %s6 = inlined_call_operand.vmem [shape: f32[1,8], index: 6, kind: input, shape index: {}]
  %s7 = inlined_call_operand.hbm [shape: f32[2,8,8], index: 7, kind: output, shape index: {}]
  %s8 = sld [smem:[#allocation0]]
  $region61: #{tpu_custom_call.1} parent=0
    _
  %s10 = ssub.s32 1, %s8
  %s11 = scalar_select 0, %s10, %s8
  $region1: #{tpu_custom_call.1} parent=0
    #allocation3 [shape = 'u8[8192]{0}', space=vmem, size = 0x2000, scoped, tag = 'output window, operand 0']
    #allocation4 [shape = 's32[2]{0}', space=sflag, size = 0x8, scoped, tag = 'scoped memory for tpu_custom_call.1']
    %12 = vsyncpa [#allocation4], 0
    %s13 = scalar_lea.sflag [#allocation4], 1
    %14 = vsyncpa %s13, 0
    loop: start=0, step=1, limit=4
    $region2: #{tpu_custom_call.1} parent=1 // loop_pre_header
      _
    $region3: #{tpu_custom_call.1} parent=1 // loop_header
      %s16 = sphi 0, %s20
      %p17 = scmp.ge.s32.totalorder %s16, 4
      %s26 = sphi 0, %s28
      %s29 = sphi 0, %s26
      %s30 = sphi 0, %s29
      %s46 = sphi 0, %s30
      %s50 = sphi 0, %s50
      %s52 = sphi 0, %s50
      %s53 = sphi 0, %s52
      %s67 = sphi 0, %s53
      %s71 = sphi 0, %s71
      %s73 = sphi 0, %s71
      %s74 = sphi 0, %s73
      %s88 = sphi 0, %s74
      %s92 = sphi 0, %s92
      %s94 = sphi 0, %s92
      %s95 = sphi 0, %s94
      %s109 = sphi 0, %s95
      %s113 = sphi 0, %s113
      %s115 = sphi 0, %s113
      %s116 = sphi 0, %s115
      %s130 = sphi 0, %s116
      %s134 = sphi 0, %s134
      %s136 = sphi 0, %s134
      %s137 = sphi 0, %s136
      %s151 = sphi 0, %s137
      %s155 = sphi 0, %s155
      %s157 = sphi 0, %s155
      %s158 = sphi 0, %s157
      %s172 = sphi 0, %s158
      %s178 = sphi 0, %s180
      %s181 = sphi 0, %s178
      %s182 = sphi 0, %s181
      %s198 = sphi 0, %s182
    $region4: #{tpu_custom_call.1} parent=1 // loop_header_branch
      %19 = sbr.rel (%p17) target = $region8
    $region5: #{tpu_custom_call.1} parent=1 // loop_body
      %s21 = ssub.s32 %s16, 1
      %s22 = ssub.s32 %s16, 2
      %s23 = sadd.s32 %s16, 1
      %s24 = ssub.s32 %s16, %s23
      %p25 = scmp.eq.s32.totalorder %s24, 0
      %s27 = sadd.s32 %s26, 1
      %s28 = scalar_select %p25, %s26, %s27
      %p31 = pneg %p25
      %p32 = scmp.eq.s32.totalorder %s16, 1
      %p33 = por %p31, %p32
      %p34 = scmp.ne.s32.totalorder %s26, %s29
      %p35 = scmp.eq.s32.totalorder %s16, 0
      %p36 = por %p34, %p35
      %p37 = scmp.ne.s32.totalorder %s26, %s29
      %p38 = scmp.eq.s32.totalorder %s21, 1
      %p39 = por %p37, %p38
      %p40 = scmp.ne.s32.totalorder %s29, %s30
      %p41 = scmp.eq.s32.totalorder %s21, 0
      %p42 = por %p40, %p41
      %p43 = scmp.ne.s32.totalorder %s29, %s30
      %p44 = scmp.eq.s32.totalorder %s22, 1
      %p45 = por %p43, %p44
      %p47 = scmp.ne.s32.totalorder %s30, %s46
      %p48 = scmp.eq.s32.totalorder %s22, 0
      %p49 = por %p47, %p48
      %s51 = sadd.s32 %s50, 1
      %p54 = scmp.eq.s32.totalorder %s16, 1
      %p55 = scmp.ne.s32.totalorder %s50, %s52
      %p56 = scmp.eq.s32.totalorder %s16, 0
      %p57 = por %p55, %p56
      %p58 = scmp.ne.s32.totalorder %s50, %s52
      %p59 = scmp.eq.s32.totalorder %s21, 1
      %p60 = por %p58, %p59
      %p61 = scmp.ne.s32.totalorder %s52, %s53
      %p62 = scmp.eq.s32.totalorder %s21, 0
      %p63 = por %p61, %p62
      %p64 = scmp.ne.s32.totalorder %s52, %s53
      %p65 = scmp.eq.s32.totalorder %s22, 1
      %p66 = por %p64, %p65
      %p68 = scmp.ne.s32.totalorder %s53, %s67
      %p69 = scmp.eq.s32.totalorder %s22, 0
      %p70 = por %p68, %p69
      %s72 = sadd.s32 %s71, 1
      %p75 = scmp.eq.s32.totalorder %s16, 1
      %p76 = scmp.ne.s32.totalorder %s71, %s73
      %p77 = scmp.eq.s32.totalorder %s16, 0
      %p78 = por %p76, %p77
      %p79 = scmp.ne.s32.totalorder %s71, %s73
      %p80 = scmp.eq.s32.totalorder %s21, 1
      %p81 = por %p79, %p80
      %p82 = scmp.ne.s32.totalorder %s73, %s74
      %p83 = scmp.eq.s32.totalorder %s21, 0
      %p84 = por %p82, %p83
      %p85 = scmp.ne.s32.totalorder %s73, %s74
      %p86 = scmp.eq.s32.totalorder %s22, 1
      %p87 = por %p85, %p86
      %p89 = scmp.ne.s32.totalorder %s74, %s88
      %p90 = scmp.eq.s32.totalorder %s22, 0
      %p91 = por %p89, %p90
      %s93 = sadd.s32 %s92, 1
      %p96 = scmp.eq.s32.totalorder %s16, 1
      %p97 = scmp.ne.s32.totalorder %s92, %s94
      %p98 = scmp.eq.s32.totalorder %s16, 0
      %p99 = por %p97, %p98
      %p100 = scmp.ne.s32.totalorder %s92, %s94
      %p101 = scmp.eq.s32.totalorder %s21, 1
      %p102 = por %p100, %p101
      %p103 = scmp.ne.s32.totalorder %s94, %s95
      %p104 = scmp.eq.s32.totalorder %s21, 0
      %p105 = por %p103, %p104
      %p106 = scmp.ne.s32.totalorder %s94, %s95
      %p107 = scmp.eq.s32.totalorder %s22, 1
      %p108 = por %p106, %p107
      %p110 = scmp.ne.s32.totalorder %s95, %s109
      %p111 = scmp.eq.s32.totalorder %s22, 0
      %p112 = por %p110, %p111
      %s114 = sadd.s32 %s113, 1
      %p117 = scmp.eq.s32.totalorder %s16, 1
      %p118 = scmp.ne.s32.totalorder %s113, %s115
      %p119 = scmp.eq.s32.totalorder %s16, 0
      %p120 = por %p118, %p119
      %p121 = scmp.ne.s32.totalorder %s113, %s115
      %p122 = scmp.eq.s32.totalorder %s21, 1
      %p123 = por %p121, %p122
      %p124 = scmp.ne.s32.totalorder %s115, %s116
      %p125 = scmp.eq.s32.totalorder %s21, 0
      %p126 = por %p124, %p125
      %p127 = scmp.ne.s32.totalorder %s115, %s116
      %p128 = scmp.eq.s32.totalorder %s22, 1
      %p129 = por %p127, %p128
      %p131 = scmp.ne.s32.totalorder %s116, %s130
      %p132 = scmp.eq.s32.totalorder %s22, 0
      %p133 = por %p131, %p132
      %s135 = sadd.s32 %s134, 1
      %p138 = scmp.eq.s32.totalorder %s16, 1
      %p139 = scmp.ne.s32.totalorder %s134, %s136
      %p140 = scmp.eq.s32.totalorder %s16, 0
      %p141 = por %p139, %p140
      %p142 = scmp.ne.s32.totalorder %s134, %s136
      %p143 = scmp.eq.s32.totalorder %s21, 1
      %p144 = por %p142, %p143
      %p145 = scmp.ne.s32.totalorder %s136, %s137
      %p146 = scmp.eq.s32.totalorder %s21, 0
      %p147 = por %p145, %p146
      %p148 = scmp.ne.s32.totalorder %s136, %s137
      %p149 = scmp.eq.s32.totalorder %s22, 1
      %p150 = por %p148, %p149
      %p152 = scmp.ne.s32.totalorder %s137, %s151
      %p153 = scmp.eq.s32.totalorder %s22, 0
      %p154 = por %p152, %p153
      %s156 = sadd.s32 %s155, 1
      %p159 = scmp.eq.s32.totalorder %s16, 1
      %p160 = scmp.ne.s32.totalorder %s155, %s157
      %p161 = scmp.eq.s32.totalorder %s16, 0
      %p162 = por %p160, %p161
      %p163 = scmp.ne.s32.totalorder %s155, %s157
      %p164 = scmp.eq.s32.totalorder %s21, 1
      %p165 = por %p163, %p164
      %p166 = scmp.ne.s32.totalorder %s157, %s158
      %p167 = scmp.eq.s32.totalorder %s21, 0
      %p168 = por %p166, %p167
      %p169 = scmp.ne.s32.totalorder %s157, %s158
      %p170 = scmp.eq.s32.totalorder %s22, 1
      %p171 = por %p169, %p170
      %p173 = scmp.ne.s32.totalorder %s158, %s172
      %p174 = scmp.eq.s32.totalorder %s22, 0
      %p175 = por %p173, %p174
      %s176 = ssub.s32 %s16, %s23
      %p177 = scmp.eq.s32.totalorder %s176, 0
      %s179 = sadd.s32 %s178, 1
      %s180 = scalar_select %p177, %s178, %s179
      %p183 = pneg %p177
      %p184 = scmp.eq.s32.totalorder %s16, 1
      %p185 = por %p183, %p184
      %p186 = scmp.ne.s32.totalorder %s178, %s181
      %p187 = scmp.eq.s32.totalorder %s16, 0
      %p188 = por %p186, %p187
      %p189 = scmp.ne.s32.totalorder %s178, %s181
      %p190 = scmp.eq.s32.totalorder %s21, 1
      %p191 = por %p189, %p190
      %p192 = scmp.ne.s32.totalorder %s181, %s182
      %p193 = scmp.eq.s32.totalorder %s21, 0
      %p194 = por %p192, %p193
      %p195 = scmp.ne.s32.totalorder %s181, %s182
      %p196 = scmp.eq.s32.totalorder %s22, 1
      %p197 = por %p195, %p196
      %p199 = scmp.ne.s32.totalorder %s182, %s198
      %p200 = scmp.eq.s32.totalorder %s22, 0
      %p201 = por %p199, %p200
      %p202 = scmp.le.s32.totalorder 1, %s16
      %p203 = scmp.lt.s32.totalorder %s16, 3
      %p204 = pnand %p202, %p203
      %p205 = pneg %p204
      // Predicated region
      $region9: #{tpu_custom_call.1} parent=5 // pred_check
        _
      $region10: #{tpu_custom_call.1} parent=5 // pred_check_branch
        %207 = sbr.rel (%p204) target = $region12
      $region11: #{tpu_custom_call.1} parent=5 // pred_region
        %s208 = ssub.s32 %s16, 1
        // Predicated region
        $region13: #{tpu_custom_call.1} parent=11 // pred_check
          %p209 = pneg %p63
        $region14: #{tpu_custom_call.1} parent=11 // pred_check_branch
          %211 = sbr.rel (%p209) target = $region16
        $region15: #{tpu_custom_call.1} parent=11 // pred_region
          _
        $region16: #{tpu_custom_call.1} parent=11 // pred_fallthru
          _
        // Predicated region
        $region17: #{tpu_custom_call.1} parent=11 // pred_check
          %p212 = pneg %p84
        $region18: #{tpu_custom_call.1} parent=11 // pred_check_branch
          %214 = sbr.rel (%p212) target = $region20
        $region19: #{tpu_custom_call.1} parent=11 // pred_region
          _
        $region20: #{tpu_custom_call.1} parent=11 // pred_fallthru
          _
        // Predicated region
        $region21: #{tpu_custom_call.1} parent=11 // pred_check
          %p215 = pneg %p105
        $region22: #{tpu_custom_call.1} parent=11 // pred_check_branch
          %217 = sbr.rel (%p215) target = $region24
        $region23: #{tpu_custom_call.1} parent=11 // pred_region
          _
        $region24: #{tpu_custom_call.1} parent=11 // pred_fallthru
          _
        // Predicated region
        $region25: #{tpu_custom_call.1} parent=11 // pred_check
          %p218 = pneg %p126
        $region26: #{tpu_custom_call.1} parent=11 // pred_check_branch
          %220 = sbr.rel (%p218) target = $region28
        $region27: #{tpu_custom_call.1} parent=11 // pred_region
          _
        $region28: #{tpu_custom_call.1} parent=11 // pred_fallthru
          _
        // Predicated region
        $region29: #{tpu_custom_call.1} parent=11 // pred_check
          %p221 = pneg %p147
        $region30: #{tpu_custom_call.1} parent=11 // pred_check_branch
          %223 = sbr.rel (%p221) target = $region32
        $region31: #{tpu_custom_call.1} parent=11 // pred_region
          _
        $region32: #{tpu_custom_call.1} parent=11 // pred_fallthru
          _
        // Predicated region
        $region33: #{tpu_custom_call.1} parent=11 // pred_check
          %p224 = pneg %p168
        $region34: #{tpu_custom_call.1} parent=11 // pred_check_branch
          %226 = sbr.rel (%p224) target = $region36
        $region35: #{tpu_custom_call.1} parent=11 // pred_region
          _
        $region36: #{tpu_custom_call.1} parent=11 // pred_fallthru
          _
      $region12: #{tpu_custom_call.1} parent=5 // pred_fallthru
        _
      %p227 = scmp.lt.s32.totalorder %s16, 2
      // Predicated region
      $region37: #{tpu_custom_call.1} parent=5 // pred_check
        %p228 = pneg %p227
      $region38: #{tpu_custom_call.1} parent=5 // pred_check_branch
        %230 = sbr.rel (%p228) target = $region40
      $region39: #{tpu_custom_call.1} parent=5 // pred_region
        // Predicated region
        $region41: #{tpu_custom_call.1} parent=39 // pred_check
          %p231 = pneg %p36
        $region42: #{tpu_custom_call.1} parent=39 // pred_check_branch
          %233 = sbr.rel (%p231) target = $region44
        $region43: #{tpu_custom_call.1} parent=39 // pred_region
          %p234 = scmp.lt.s32.totalorder %s16, 1
          %s235 = scalar_select %p234, %s16, 1
          %s236 = smul.addr %s235, 2
          %s237 = smul.addr %s236, 8
          %s238 = scalar_lea.vmem %s0, %s237
        $region44: #{tpu_custom_call.1} parent=39 // pred_fallthru
          _
      $region40: #{tpu_custom_call.1} parent=5 // pred_fallthru
        _
      %p239 = scmp.le.s32.totalorder 1, %s16
      %p240 = scmp.lt.s32.totalorder %s16, 3
      %p241 = pnand %p239, %p240
      %p242 = pneg %p241
      // Predicated region
      $region45: #{tpu_custom_call.1} parent=5 // pred_check
        _
      $region46: #{tpu_custom_call.1} parent=5 // pred_check_branch
        %244 = sbr.rel (%p241) target = $region48
      $region47: #{tpu_custom_call.1} parent=5 // pred_region
        %s245 = ssub.s32 %s16, 1
        %p246 = scmp.lt.s32.totalorder %s21, 1
        %s247 = scalar_select %p246, %s21, 1
        %s248 = smul.addr %s247, 2
        %s249 = smul.addr %s248, 8
        %s250 = scalar_lea.vmem %s0, %s249
        %p251 = pneg %p42
        %p252 = pneg %p39
        %p253 = pneg %p63
        %p254 = pneg %p60
        %p255 = pneg %p84
        %p256 = pneg %p81
        %p257 = pneg %p105
        %p258 = pneg %p102
        %p259 = pneg %p126
        %p260 = pneg %p123
        %p261 = pneg %p147
        %p262 = pneg %p144
        %p263 = pneg %p168
        %p264 = pneg %p165
        %p265 = pneg %p194
        %p266 = pneg %p191
        %s267 = sand.u32 %s181, 1
        %s268 = scalar_lea.sflag [#allocation4], %s267
        %s269 = sand.u32 %s181, 1
        %s270 = smul.addr %s269, 8
        %s271 = scalar_lea.vmem [#allocation3], %s270
        %p272 = scmp.lt.s32.totalorder %s21, 1
        %s273 = scalar_select %p272, %s21, 1
        %s274 = smul.addr %s273, 2
        %s275 = smul.addr %s274, 8
        %s276 = scalar_lea.vmem %s0, %s275
        %vm278 = vcmask 64512
        %279 = vst.msk [vmem:[#allocation2] sm:$0xff] %vm278, 0.0
        %vm280 = vcmask 58368
        %281 = vst.msk [vmem:[#allocation2 + $0x8] sm:$0x3] %vm280, 0.0
        %v282 = vld [vmem:[%s2] sm:$0x1]
        %v284 = vperm.slane %v282, 0
        %v286 = vadd.f32 %v284, 0.0
        %v287 = vld [vmem:[%s276] sm:$0xff]
        %v288 = vpack.c.bf16 %v287, %v287
        %v289 = vld [vmem:[%s1] sm:$0x3]
        %vm290 = vcmask 31744
        %v292 = vsel %vm290, %v288, 0
        %vm294 = vcmask 1041408
        %v296 = vsel %vm294, %v289, 0
        %298 = vmatpush.bf16.msra.mxu0 0
        %299 = vmatpush.bf16.msra.mxu0 0
        %300 = vmatpush.bf16.msra.mxu0 0
        %301 = vmatpush.bf16.msra.mxu0 0
        %302 = vmatpush.bf16.msra.mxu0 0
        %303 = vmatpush.bf16.msra.mxu0 0
        %304 = vmatpush.bf16.msra.mxu0 0
        %305 = vmatpush.bf16.msra.mxu0 %v296
        %306 = vmatmul.bf16.gmra.mxu0 %v292
        %v307 = vpop.f32.mrf.mxu0
        %v308 = vadd.f32 0.0, %v307
        %v309 = vpop.f32.mrf.mxu0
        %310 = vdwg.mxu0
        %v311 = vadd.f32 %v286, %v308
        %v312 = vld [vmem:[%s276 + $0x1] sm:$0xff]
        %v313 = vpack.c.bf16 %v312, %v312
        %s314 = scalar_lea.vmem %s1, 2
        %v315 = vld [vmem:[%s314] sm:$0x3]
        %v317 = vsel %vm290, %v313, 0
        %v320 = vsel %vm294, %v315, 0
        %322 = vmatpush.bf16.msra.mxu0 0
        %323 = vmatpush.bf16.msra.mxu0 0
        %324 = vmatpush.bf16.msra.mxu0 0
        %325 = vmatpush.bf16.msra.mxu0 0
        %326 = vmatpush.bf16.msra.mxu0 0
        %327 = vmatpush.bf16.msra.mxu0 0
        %328 = vmatpush.bf16.msra.mxu0 0
        %329 = vmatpush.bf16.msra.mxu0 %v320
        %330 = vmatmul.bf16.gmra.mxu0 %v317
        %v331 = vpop.f32.mrf.mxu0
        %v332 = vadd.f32 0.0, %v331
        %v333 = vpop.f32.mrf.mxu0
        %334 = vdwg.mxu0
        %v335 = vadd.f32 %v311, %v332
        %v336 = vld [vmem:[%s276 + $0x2] sm:$0xff]
        %v337 = vpack.c.bf16 %v336, %v336
        %s338 = scalar_lea.vmem %s1, 4
        %v339 = vld [vmem:[%s338] sm:$0x3]
        %v341 = vsel %vm290, %v337, 0
        %v344 = vsel %vm294, %v339, 0
        %346 = vmatpush.bf16.msra.mxu0 0
        %347 = vmatpush.bf16.msra.mxu0 0
        %348 = vmatpush.bf16.msra.mxu0 0
        %349 = vmatpush.bf16.msra.mxu0 0
        %350 = vmatpush.bf16.msra.mxu0 0
        %351 = vmatpush.bf16.msra.mxu0 0
        %352 = vmatpush.bf16.msra.mxu0 0
        %353 = vmatpush.bf16.msra.mxu0 %v344
        %354 = vmatmul.bf16.gmra.mxu0 %v341
        %v355 = vpop.f32.mrf.mxu0
        %v356 = vadd.f32 0.0, %v355
        %v357 = vpop.f32.mrf.mxu0
        %358 = vdwg.mxu0
        %v359 = vadd.f32 %v335, %v356
        %vm360 = vcmp.gt.f32.partialorder %v359, 0.0
        %v361 = vmul.f32 %v359, 0.2
        %v362 = vsel %vm360, %v359, %v361
        %363 = vst.msk [vmem:[#allocation2 + $0x1] sm:$0xff] %vm278, %v362
        %v364 = vld [vmem:[%s4] sm:$0x1]
        %v366 = vperm.slane %v364, 0
        %v368 = vadd.f32 %v366, 0.0
        %v369 = vld [vmem:[#allocation2] sm:$0xff]
        %v370 = vpack.c.bf16 %v369, %v369
        %v371 = vld [vmem:[%s3] sm:$0xf]
        %v373 = vsel %vm278, %v370, 0
        %vm375 = vcmask 1043456
        %v377 = vsel %vm375, %v371, 0
        %379 = vmatpush.bf16.msra.mxu0 0
        %380 = vmatpush.bf16.msra.mxu0 0
        %381 = vmatpush.bf16.msra.mxu0 0
        %382 = vmatpush.bf16.msra.mxu0 0
        %383 = vmatpush.bf16.msra.mxu0 0
        %384 = vmatpush.bf16.msra.mxu0 0
        %385 = vmatpush.bf16.msra.mxu0 0
        %386 = vmatpush.bf16.msra.mxu0 %v377
        %387 = vmatmul.bf16.gmra.mxu0 %v373
        %v388 = vpop.f32.mrf.mxu0
        %v389 = vadd.f32 0.0, %v388
        %v390 = vpop.f32.mrf.mxu0
        %391 = vdwg.mxu0
        %v392 = vadd.f32 %v368, %v389
        %v393 = vld [vmem:[#allocation2 + $0x1] sm:$0xff]
        %v394 = vpack.c.bf16 %v393, %v393
        %s395 = scalar_lea.vmem %s3, 4
        %v396 = vld [vmem:[%s395] sm:$0xf]
        %v398 = vsel %vm278, %v394, 0
        %v401 = vsel %vm375, %v396, 0
        %403 = vmatpush.bf16.msra.mxu0 0
        %404 = vmatpush.bf16.msra.mxu0 0
        %405 = vmatpush.bf16.msra.mxu0 0
        %406 = vmatpush.bf16.msra.mxu0 0
        %407 = vmatpush.bf16.msra.mxu0 0
        %408 = vmatpush.bf16.msra.mxu0 0
        %409 = vmatpush.bf16.msra.mxu0 0
        %410 = vmatpush.bf16.msra.mxu0 %v401
        %411 = vmatmul.bf16.gmra.mxu0 %v398
        %v412 = vpop.f32.mrf.mxu0
        %v413 = vadd.f32 0.0, %v412
        %v414 = vpop.f32.mrf.mxu0
        %415 = vdwg.mxu0
        %v416 = vadd.f32 %v392, %v413
        %v417 = vld [vmem:[#allocation2 + $0x2] sm:$0xff]
        %v418 = vpack.c.bf16 %v417, %v417
        %s419 = scalar_lea.vmem %s3, 8
        %v420 = vld [vmem:[%s419] sm:$0xf]
        %v422 = vsel %vm278, %v418, 0
        %v425 = vsel %vm375, %v420, 0
        %427 = vmatpush.bf16.msra.mxu0 0
        %428 = vmatpush.bf16.msra.mxu0 0
        %429 = vmatpush.bf16.msra.mxu0 0
        %430 = vmatpush.bf16.msra.mxu0 0
        %431 = vmatpush.bf16.msra.mxu0 0
        %432 = vmatpush.bf16.msra.mxu0 0
        %433 = vmatpush.bf16.msra.mxu0 0
        %434 = vmatpush.bf16.msra.mxu0 %v425
        %435 = vmatmul.bf16.gmra.mxu0 %v422
        %v436 = vpop.f32.mrf.mxu0
        %v437 = vadd.f32 0.0, %v436
        %v438 = vpop.f32.mrf.mxu0
        %439 = vdwg.mxu0
        %v440 = vadd.f32 %v416, %v437
        %vm441 = vcmp.gt.f32.partialorder %v440, 0.0
        %v442 = vmul.f32 %v440, 0.2
        %v443 = vsel %vm441, %v440, %v442
        %444 = vst.msk [vmem:[#allocation2 + $0x1] sm:$0xff] %vm278, %v443
        %v445 = vld [vmem:[%s6] sm:$0x1]
        %v447 = vperm.slane %v445, 0
        %v449 = vadd.f32 %v447, 0.0
        %v450 = vld [vmem:[#allocation2] sm:$0xff]
        %v451 = vpack.c.bf16 %v450, %v450
        %v452 = vld [vmem:[%s5] sm:$0xf]
        %v454 = vsel %vm278, %v451, 0
        %v457 = vsel %vm375, %v452, 0
        %459 = vmatpush.bf16.msra.mxu0 0
        %460 = vmatpush.bf16.msra.mxu0 0
        %461 = vmatpush.bf16.msra.mxu0 0
        %462 = vmatpush.bf16.msra.mxu0 0
        %463 = vmatpush.bf16.msra.mxu0 0
        %464 = vmatpush.bf16.msra.mxu0 0
        %465 = vmatpush.bf16.msra.mxu0 0
        %466 = vmatpush.bf16.msra.mxu0 %v457
        %467 = vmatmul.bf16.gmra.mxu0 %v454
        %v468 = vpop.f32.mrf.mxu0
        %v469 = vadd.f32 0.0, %v468
        %v470 = vpop.f32.mrf.mxu0
        %471 = vdwg.mxu0
        %v472 = vadd.f32 %v449, %v469
        %v473 = vld [vmem:[#allocation2 + $0x1] sm:$0xff]
        %v474 = vpack.c.bf16 %v473, %v473
        %s475 = scalar_lea.vmem %s5, 4
        %v476 = vld [vmem:[%s475] sm:$0xf]
        %v478 = vsel %vm278, %v474, 0
        %v481 = vsel %vm375, %v476, 0
        %483 = vmatpush.bf16.msra.mxu0 0
        %484 = vmatpush.bf16.msra.mxu0 0
        %485 = vmatpush.bf16.msra.mxu0 0
        %486 = vmatpush.bf16.msra.mxu0 0
        %487 = vmatpush.bf16.msra.mxu0 0
        %488 = vmatpush.bf16.msra.mxu0 0
        %489 = vmatpush.bf16.msra.mxu0 0
        %490 = vmatpush.bf16.msra.mxu0 %v481
        %491 = vmatmul.bf16.gmra.mxu0 %v478
        %v492 = vpop.f32.mrf.mxu0
        %v493 = vadd.f32 0.0, %v492
        %v494 = vpop.f32.mrf.mxu0
        %495 = vdwg.mxu0
        %v496 = vadd.f32 %v472, %v493
        %v497 = vld [vmem:[#allocation2 + $0x2] sm:$0xff]
        %v498 = vpack.c.bf16 %v497, %v497
        %s499 = scalar_lea.vmem %s5, 8
        %v500 = vld [vmem:[%s499] sm:$0xf]
        %v502 = vsel %vm278, %v498, 0
        %v505 = vsel %vm375, %v500, 0
        %507 = vmatpush.bf16.msra.mxu0 0
        %508 = vmatpush.bf16.msra.mxu0 0
        %509 = vmatpush.bf16.msra.mxu0 0
        %510 = vmatpush.bf16.msra.mxu0 0
        %511 = vmatpush.bf16.msra.mxu0 0
        %512 = vmatpush.bf16.msra.mxu0 0
        %513 = vmatpush.bf16.msra.mxu0 0
        %514 = vmatpush.bf16.msra.mxu0 %v505
        %515 = vmatmul.bf16.gmra.mxu0 %v502
        %v516 = vpop.f32.mrf.mxu0
        %v517 = vadd.f32 0.0, %v516
        %v518 = vpop.f32.mrf.mxu0
        %519 = vdwg.mxu0
        %v520 = vadd.f32 %v496, %v517
        %vm521 = vcmp.gt.f32.partialorder %v520, 0.0
        %v522 = vmul.f32 %v520, 0.2
        %v523 = vsel %vm521, %v520, %v522
        %524 = vst.msk [vmem:[%s271] sm:$0xff] %vm278, %v523
        %s525 = sand.u32 %s181, 1
        %s526 = scalar_lea.sflag [#allocation4], %s525
        %s527 = sand.u32 %s181, 1
        %s528 = smul.addr %s527, 8
        %s529 = scalar_lea.vmem [#allocation3], %s528
        // Predicated region
        $region49: #{tpu_custom_call.1} parent=47 // pred_check
          %p530 = pneg %p191
        $region50: #{tpu_custom_call.1} parent=47 // pred_check_branch
          %532 = sbr.rel (%p530) target = $region52
        $region51: #{tpu_custom_call.1} parent=47 // pred_region
          %534 = vsyncadd %s526, 0
          %s535 = smul.addr %s21, 8
          %s536 = scalar_lea.hbm %s7, %s535
          %s538 = sshll.u32 %s529, 4
          %s539 = int_to_ptr.vmem [resolvable:$true] %s538
          %s540 = sshll.u32 %s536, 4
          %s541 = int_to_ptr.hbm [resolvable:$true] %s540
          %543 = dma.vmem_to_hbm [thread:$0]  %s539, 128, %s541, %s526
        $region52: #{tpu_custom_call.1} parent=47 // pred_fallthru
          _
      $region48: #{tpu_custom_call.1} parent=5 // pred_fallthru
        _
      %p544 = scmp.le.s32.totalorder 2, %s16
      // Predicated region
      $region53: #{tpu_custom_call.1} parent=5 // pred_check
        %p545 = pneg %p544
      $region54: #{tpu_custom_call.1} parent=5 // pred_check_branch
        %547 = sbr.rel (%p545) target = $region56
      $region55: #{tpu_custom_call.1} parent=5 // pred_region
        %s548 = ssub.s32 %s16, 2
        // Predicated region
        $region57: #{tpu_custom_call.1} parent=55 // pred_check
          %p549 = pneg %p197
        $region58: #{tpu_custom_call.1} parent=55 // pred_check_branch
          %551 = sbr.rel (%p549) target = $region60
        $region59: #{tpu_custom_call.1} parent=55 // pred_region
          %s552 = sand.u32 %s182, 1
          %s553 = scalar_lea.sflag [#allocation4], %s552
          %s554 = sand.u32 %s182, 1
          %s555 = smul.addr %s554, 8
          %s556 = scalar_lea.vmem [#allocation3], %s555
          %558 = dma.done %s553, 128
        $region60: #{tpu_custom_call.1} parent=55 // pred_fallthru
          _
      $region56: #{tpu_custom_call.1} parent=5 // pred_fallthru
        _
    $region6: #{tpu_custom_call.1} parent=1 // loop_footer
      %s20 = sadd.s32 1, %s16
    $region7: #{tpu_custom_call.1} parent=1 // loop_footer_branch
      %15 = sbr.rel target = $region3
    $region8: #{tpu_custom_call.1} parent=1 // loop_exit
      _
    %559 = vsyncpa [#allocation4], 1
    %s560 = scalar_lea.sflag [#allocation4], 1
    %561 = vsyncpa %s560, 1

</llo_original>
